<compile_context>
chip_gen: v7x
topology: tpu7x:2x2x1
jax: 0.10.0
libtpu: 0.0.40
codegen_flags: <defaults>
</compile_context>

<pallas_src>
import functools

import jax
import jax.numpy as jnp
from jax.experimental import pallas as pl
from jax.experimental.pallas import tpu as pltpu


def _round_up(x, m):
    return (x + m - 1) // m * m


def _cdiv(a, b):
    return (a + b - 1) // b


def _vmem_capacity_bytes():
    # Generation-aware VMEM capacity (v5e/v6e: 128 MiB; v7x: 64 MiB per TensorCore).
    try:
        return int(pltpu.get_tpu_info().vmem_capacity_bytes)
    except Exception:
        return 64 * 1024 * 1024  # conservative default = v7x per-TC size


def _layernorm_rows(z, g, b, inv_d, eps):
    # One-pass LN stats in f32; padded lanes of z are exactly 0 and inv_d uses the real
    # d_model, so padding is numerically inert. Guard var against f32 cancellation.
    s1 = jnp.sum(z, axis=-1, keepdims=True)
    s2 = jnp.sum(z * z, axis=-1, keepdims=True)
    mean = s1 * inv_d
    var = jnp.maximum(s2 * inv_d - mean * mean, 0.0)
    zn = (z - mean) * jax.lax.rsqrt(var + eps)
    return zn * g.astype(jnp.float32) + b.astype(jnp.float32)


def ffn_addnorm_kernel(x_ref, w1_ref, w2_ref, g_ref, b_ref, o_ref, *, inv_d, eps):
    # Resident-weight path: x (TILE_ROWS, dmp), W1 (dmp, dfp), W2 (dfp, dmp), g/b (1, dmp).
    x = x_ref[...]
    xm = x.astype(w1_ref.dtype)                         # no-op unless mxu_dtype is set
    h = jnp.maximum(jnp.dot(xm, w1_ref[...], preferred_element_type=jnp.float32), 0.0)
    y = jnp.dot(h.astype(w2_ref.dtype), w2_ref[...], preferred_element_type=jnp.float32)
    z = y + x.astype(jnp.float32)
    o_ref[...] = _layernorm_rows(z, g_ref[...], b_ref[...], inv_d, eps).astype(o_ref.dtype)


def ffn_addnorm_split_kernel(x_ref, w1_ref, w2_ref, g_ref, b_ref, o_ref, acc_ref,
                             *, inv_d, eps):
    # d_ff-split path: W1 (dmp, tile_dff) and W2 (tile_dff, dmp) stream along grid axis 1,
    # f32 accumulator in VMEM scratch. ReLU is elementwise over d_ff, so per-chunk ReLU is
    # exact: relu(x @ W1)[:, chunk] == relu(x @ W1[:, chunk]).
    k = pl.program_id(1)

    @pl.when(k == 0)
    def _():
        acc_ref[...] = jnp.zeros_like(acc_ref)

    x = x_ref[...]
    xm = x.astype(w1_ref.dtype)
    h = jnp.maximum(jnp.dot(xm, w1_ref[...], preferred_element_type=jnp.float32), 0.0)
    acc_ref[...] += jnp.dot(h.astype(w2_ref.dtype), w2_ref[...],
                            preferred_element_type=jnp.float32)

    @pl.when(k == pl.num_programs(1) - 1)
    def _():
        z = acc_ref[...] + x.astype(jnp.float32)
        o_ref[...] = _layernorm_rows(z, g_ref[...], b_ref[...], inv_d, eps).astype(o_ref.dtype)


def ffn_reference(x, w1, w2, gamma, beta, eps=1e-5):
    h = jnp.maximum(jnp.einsum("bsd,df->bsf", x, w1), 0.0)
    y = jnp.einsum("bsf,fd->bsd", h, w2)
    z = y + x
    mean = jnp.mean(z, axis=-1, keepdims=True)
    var = jnp.mean((z - mean) ** 2, axis=-1, keepdims=True)
    return (z - mean) / jnp.sqrt(var + eps) * gamma + beta


def poswise_ffn(x, w1, w2, gamma, beta, *, tile_rows=512, tile_dff=1024, eps=1e-5,
                split_dff=None, mxu_dtype=None, force_kernel=False):
    """x: [B, S, d_model]; w1: [d_model, d_ff]; w2: [d_ff, d_model]; gamma/beta: [d_model].

    Weights are pre-transposed relative to torch.nn.Linear.weight so the kernel does plain
    `x @ W` matmuls on the MXU. split_dff: None=auto, True/False forces the d_ff-split path.
    mxu_dtype: e.g. jnp.bfloat16 to run matmuls on the bf16 MXU with f32 accumulation.
    """
    B, S, d_model = x.shape
    d_ff = w1.shape[1]
    rows = B * S

    # ---- small-problem fallback: fused XLA beats a padded-to-128 single-tile kernel.
    if not force_kernel and (d_model < 128 or 2 * rows * d_model * d_ff < (1 << 22)):
        return ffn_reference(x, w1, w2, gamma, beta, eps=eps).astype(x.dtype)

    if mxu_dtype is not None:
        w1 = w1.astype(mxu_dtype)
        w2 = w2.astype(mxu_dtype)

    x_it = jnp.dtype(x.dtype).itemsize
    w_it = jnp.dtype(w1.dtype).itemsize
    sub = {4: 8, 2: 16, 1: 32}.get(x_it, 8)

    # ---- layout: lane-dense feature dims, sublane-aligned row tiles.
    dmp = _round_up(d_model, 128)
    dfp_resident = _round_up(d_ff, 128)
    tile_rows = _round_up(max(sub, min(int(tile_rows), _round_up(rows, sub))), sub)

    vmem_cap = _vmem_capacity_bytes()
    vmem_budget = int(0.85 * vmem_cap)          # headroom for Mosaic internal scratch

    # ---- choose resident vs d_ff-split weights from the actual VMEM budget.
    can_single_buffer = hasattr(pl, "Buffered")
    wbuf0 = 1 if can_single_buffer else 2
    io_bytes0 = 2 * 2 * tile_rows * dmp * x_it                    # double-buffered x + out
    resident_need = int(1.2 * (wbuf0 * 2 * dmp * dfp_resident * w_it
                               + io_bytes0 + 4 * tile_rows * (dfp_resident + 3 * dmp)))
    use_split = bool(split_dff) if split_dff is not None else resident_need > vmem_budget

    if use_split:
        # Weights are re-streamed once per row tile; keep the row tile large enough to
        # stay above the HBM roofline intensity (~640 rows f32 / ~320 bf16 on v7x).
        target = 640 if x_it >= 4 else 320
        tile_rows = _round_up(min(max(tile_rows, target), _round_up(rows, sub)), sub)
        tile_dff = _round_up(max(128, min(int(tile_dff), _round_up(d_ff, 128))), 128)
        dfp = _round_up(d_ff, tile_dff)
        n_k = dfp // tile_dff
    else:
        dfp = dfp_resident
        n_k = 1

    # ---- >=2 row tiles so both v7x TensorCores get work under "parallel".
    if rows > sub and _cdiv(rows, tile_rows) < 2:
        tile_rows = _round_up(_cdiv(rows, 2), sub)
    rows_p = _round_up(rows, tile_rows)
    n_row_tiles = rows_p // tile_rows

    # ---- zero-pad only when actually needed (numerically inert; see _layernorm_rows).
    x_flat = x.reshape(rows, d_model)
    if rows_p != rows or dmp != d_model:
        x2 = jnp.zeros((rows_p, dmp), x.dtype).at[:rows, :d_model].set(x_flat)
    else:
        x2 = x_flat
    if dmp != d_model or dfp != d_ff:
        # TODO(synk): cache padded weights across calls (pad once at parameter init).
        w1p = jnp.zeros((dmp, dfp), w1.dtype).at[:d_model, :d_ff].set(w1)
        w2p = jnp.zeros((dfp, dmp), w2.dtype).at[:d_ff, :d_model].set(w2)
        g2 = jnp.zeros((1, dmp), gamma.dtype).at[0, :d_model].set(gamma)
        b2 = jnp.zeros((1, dmp), beta.dtype).at[0, :d_model].set(beta)
    else:
        w1p, w2p = w1, w2
        g2, b2 = gamma.reshape(1, d_model), beta.reshape(1, d_model)

    # ---- scheduler hints.
    w_stream = (w1p.size + w2p.size) * w_it * (n_row_tiles if use_split else 1)
    flops = 4 * rows_p * dmp * dfp + 10 * rows_p * dmp
    bytes_accessed = int(x2.size * x_it + w_stream + rows_p * dmp * x_it + 2 * dmp * 4)
    cost = pl.CostEstimate(flops=int(flops), transcendentals=int(rows_p),
                           bytes_accessed=bytes_accessed)

    io_bytes = 2 * 2 * tile_rows * dmp * x_it

    def _vmem_limit(single_buffer_consts):
        if use_split:
            w_bytes = 2 * 2 * dmp * tile_dff * w_it              # double-buffered k-tiles
            tmp = 4 * tile_rows * (tile_dff + 3 * dmp) + 4 * tile_rows * dmp  # h/z + acc
        else:
            wbuf = 1 if single_buffer_consts else 2
            w_bytes = wbuf * 2 * dmp * dfp * w_it
            tmp = 4 * tile_rows * (dfp + 3 * dmp)
        need = int(1.2 * (w_bytes + io_bytes + tmp))              # 20% margin
        return int(min(vmem_budget, max(need, 8 * 1024 * 1024)))

    def _const_spec(shape, index_map, single_buffer):
        if single_buffer and can_single_buffer:
            return pl.BlockSpec(shape, index_map, pipeline_mode=pl.Buffered(1))
        return pl.BlockSpec(shape, index_map)

    def make_call(single_buffer_consts):
        single = single_buffer_consts and can_single_buffer
        if use_split:
            kernel = functools.partial(ffn_addnorm_split_kernel,
                                       inv_d=float(1.0 / d_model), eps=float(eps))
            in_specs = [
                pl.BlockSpec((tile_rows, dmp), lambda i, k: (i, 0)),       # x row-tile
                pl.BlockSpec((dmp, tile_dff), lambda i, k: (0, k)),        # W1 k-tile
                pl.BlockSpec((tile_dff, dmp), lambda i, k: (k, 0)),        # W2 k-tile
                _const_spec((1, dmp), lambda i, k: (0, 0), single),        # gamma
                _const_spec((1, dmp), lambda i, k: (0, 0), single),        # beta
            ]
            out_spec = pl.BlockSpec((tile_rows, dmp), lambda i, k: (i, 0))
            grid = (n_row_tiles, n_k)
            scratch = (pltpu.VMEM((tile_rows, dmp), jnp.float32),)
            dim_sem = ("parallel", "arbitrary")
        else:
            kernel = functools.partial(ffn_addnorm_kernel,
                                       inv_d=float(1.0 / d_model), eps=float(eps))
            in_specs = [
                pl.BlockSpec((tile_rows, dmp), lambda i: (i, 0)),          # x row-tile
                _const_spec((dmp, dfp), lambda i: (0, 0), single),         # W1 resident
                _const_spec((dfp, dmp), lambda i: (0, 0), single),         # W2 resident
                _const_spec((1, dmp), lambda i: (0, 0), single),           # gamma
                _const_spec((1, dmp), lambda i: (0, 0), single),           # beta
            ]
            out_spec = pl.BlockSpec((tile_rows, dmp), lambda i: (i, 0))
            grid = (n_row_tiles,)
            scratch = ()
            dim_sem = ("parallel",)
        return pl.pallas_call(
            kernel,
            out_shape=jax.ShapeDtypeStruct((rows_p, dmp), x.dtype),
            grid_spec=pltpu.PrefetchScalarGridSpec(
                num_scalar_prefetch=0, grid=grid,
                in_specs=in_specs, out_specs=out_spec, scratch_shapes=scratch),
            compiler_params=pltpu.CompilerParams(
                dimension_semantics=dim_sem,
                vmem_limit_bytes=_vmem_limit(single)),
            cost_estimate=cost,
        )

    try:
        out2 = make_call(True)(x2, w1p, w2p, g2, b2)
    except Exception:
        # pipeline_mode=pl.Buffered(1) not accepted by this jax build → default buffering.
        out2 = make_call(False)(x2, w1p, w2p, g2, b2)

    return out2[:rows, :d_model].reshape(B, S, d_model)


if __name__ == "__main__":
    key = jax.random.PRNGKey(0)
    kx, k1, k2, kx2, k3, k4 = jax.random.split(key, 6)

    # ---- Test 1: module-native small shape (parameter = {'d_model': 32, 'd_ff': 64},
    # batch=2, seq_len=8), forced through the resident-weight kernel path.
    B, S, d_model, d_ff = 2, 8, 32, 64
    x = jax.random.normal(kx, (B, S, d_model), dtype=jnp.float32)
    w1 = jax.random.normal(k1, (d_model, d_ff), dtype=jnp.float32) * (1.0 / jnp.sqrt(d_model))
    w2 = jax.random.normal(k2, (d_ff, d_model), dtype=jnp.float32) * (1.0 / jnp.sqrt(d_ff))
    gamma = jnp.ones((d_model,), dtype=jnp.float32)   # nn.LayerNorm default weight
    beta = jnp.zeros((d_model,), dtype=jnp.float32)   # nn.LayerNorm default bias

    out = jax.block_until_ready(poswise_ffn(x, w1, w2, gamma, beta, force_kernel=True))
    ref = ffn_reference(x, w1, w2, gamma, beta)
    assert out.shape == (B, S, d_model)
    assert jnp.allclose(out, ref, atol=2e-4, rtol=2e-4), "mismatch vs reference (resident path)"

    # ---- Test 2: lane-aligned shape forced through the d_ff-split accumulator path
    # (exercises the pl.when init/finalize + VMEM accumulator + 2-D grid).
    B2, S2, dm2, df2 = 2, 64, 128, 512
    x_b = jax.random.normal(kx2, (B2, S2, dm2), dtype=jnp.float32)
    w1_b = jax.random.normal(k3, (dm2, df2), dtype=jnp.float32) * (1.0 / jnp.sqrt(dm2))
    w2_b = jax.random.normal(k4, (df2, dm2), dtype=jnp.float32) * (1.0 / jnp.sqrt(df2))
    g_b = jnp.ones((dm2,), dtype=jnp.float32)
    b_b = jnp.zeros((dm2,), dtype=jnp.float32)

    out_b = jax.block_until_ready(
        poswise_ffn(x_b, w1_b, w2_b, g_b, b_b, force_kernel=True,
                    split_dff=True, tile_dff=256))
    ref_b = ffn_reference(x_b, w1_b, w2_b, g_b, b_b)
    assert out_b.shape == (B2, S2, dm2)
    assert jnp.allclose(out_b, ref_b, atol=2e-3, rtol=2e-3), "mismatch vs reference (split path)"

    print("KERNEL_OK")
</pallas_src>

<mosaic_0001>
module attributes {stable_mosaic.version = 11 : i64} {
  func.func @ffn_addnorm_kernel(%arg0: i32, %arg1: memref<8x128xf32, #tpu.memory_space<vmem>>, %arg2: memref<128x128xf32, #tpu.memory_space<vmem>>, %arg3: memref<128x128xf32, #tpu.memory_space<vmem>>, %arg4: memref<1x128xf32, #tpu.memory_space<vmem>>, %arg5: memref<1x128xf32, #tpu.memory_space<vmem>>, %arg6: memref<8x128xf32, #tpu.memory_space<vmem>>) attributes {dimension_semantics = [#tpu.dimension_semantics<parallel>], iteration_bounds = array<i64: 2>, scalar_prefetch = 0 : i64, scratch_operands = 0 : i64, tpu.core_type = #tpu.core_type<tc>, window_params = [{transform_indices = @transform_0, window_bounds = array<i64: 8, 128>}, {pipeline_mode = #tpu.pipeline_mode<synchronous>, transform_indices = @transform_1, window_bounds = array<i64: 128, 128>}, {pipeline_mode = #tpu.pipeline_mode<synchronous>, transform_indices = @transform_2, window_bounds = array<i64: 128, 128>}, {pipeline_mode = #tpu.pipeline_mode<synchronous>, transform_indices = @transform_3, window_bounds = array<i64: 1, 128>}, {pipeline_mode = #tpu.pipeline_mode<synchronous>, transform_indices = @transform_4, window_bounds = array<i64: 1, 128>}, {transform_indices = @transform_5, window_bounds = array<i64: 8, 128>}]} {
    %c0 = arith.constant 0 : index
    %c0_0 = arith.constant 0 : index
    %0 = vector.load %arg1[%c0, %c0_0] : memref<8x128xf32, #tpu.memory_space<vmem>>, vector<8x128xf32>
    %c0_1 = arith.constant 0 : index
    %c0_2 = arith.constant 0 : index
    %1 = vector.load %arg2[%c0_1, %c0_2] : memref<128x128xf32, #tpu.memory_space<vmem>>, vector<128x128xf32>
    %cst = arith.constant dense<0.000000e+00> : vector<8x128xf32>
    %2 = tpu.matmul %0, %1, %cst {dimension_numbers = #tpu.dot_dimension_numbers<[1], [0], [0], [1], [0, 0, 1, 1], [], []>} : vector<8x128xf32>, vector<128x128xf32>, vector<8x128xf32> -> vector<8x128xf32>
    %cst_3 = arith.constant 0.000000e+00 : f32
    %3 = vector.broadcast %cst_3 : f32 to vector<8x128xf32>
    %4 = arith.maximumf %2, %3 : vector<8x128xf32>
    %c0_4 = arith.constant 0 : index
    %c0_5 = arith.constant 0 : index
    %5 = vector.load %arg3[%c0_4, %c0_5] : memref<128x128xf32, #tpu.memory_space<vmem>>, vector<128x128xf32>
    %cst_6 = arith.constant dense<0.000000e+00> : vector<8x128xf32>
    %6 = tpu.matmul %4, %5, %cst_6 {dimension_numbers = #tpu.dot_dimension_numbers<[1], [0], [0], [1], [0, 0, 1, 1], [], []>} : vector<8x128xf32>, vector<128x128xf32>, vector<8x128xf32> -> vector<8x128xf32>
    %7 = arith.addf %6, %0 : vector<8x128xf32>
    %c0_7 = arith.constant 0 : index
    %c0_8 = arith.constant 0 : index
    %8 = vector.load %arg4[%c0_7, %c0_8] : memref<1x128xf32, #tpu.memory_space<vmem>>, vector<1x128xf32>
    %c0_9 = arith.constant 0 : index
    %c0_10 = arith.constant 0 : index
    %9 = vector.load %arg5[%c0_9, %c0_10] : memref<1x128xf32, #tpu.memory_space<vmem>>, vector<1x128xf32>
    %cst_11 = arith.constant dense<0.000000e+00> : vector<8xf32>
    %10 = vector.multi_reduction <add>, %7, %cst_11 [1] : vector<8x128xf32> to vector<8xf32>
    %11 = vector.shape_cast %10 : vector<8xf32> to vector<8x1xf32>
    %12 = arith.mulf %7, %7 : vector<8x128xf32>
    %cst_12 = arith.constant dense<0.000000e+00> : vector<8xf32>
    %13 = vector.multi_reduction <add>, %12, %cst_12 [1] : vector<8x128xf32> to vector<8xf32>
    %14 = vector.shape_cast %13 : vector<8xf32> to vector<8x1xf32>
    %cst_13 = arith.constant 3.125000e-02 : f32
    %15 = vector.broadcast %cst_13 : f32 to vector<8x1xf32>
    %16 = arith.mulf %11, %15 : vector<8x1xf32>
    %cst_14 = arith.constant 3.125000e-02 : f32
    %17 = vector.broadcast %cst_14 : f32 to vector<8x1xf32>
    %18 = arith.mulf %14, %17 : vector<8x1xf32>
    %19 = arith.mulf %16, %16 : vector<8x1xf32>
    %20 = arith.subf %18, %19 : vector<8x1xf32>
    %cst_15 = arith.constant 0.000000e+00 : f32
    %21 = vector.broadcast %cst_15 : f32 to vector<8x1xf32>
    %22 = arith.maximumf %20, %21 : vector<8x1xf32>
    %23 = vector.broadcast %16 : vector<8x1xf32> to vector<8x128xf32>
    %24 = arith.subf %7, %23 : vector<8x128xf32>
    %cst_16 = arith.constant 9.99999974E-6 : f32
    %25 = vector.broadcast %cst_16 : f32 to vector<8x1xf32>
    %26 = arith.addf %22, %25 : vector<8x1xf32>
    %27 = math.rsqrt %26 : vector<8x1xf32>
    %28 = vector.broadcast %27 : vector<8x1xf32> to vector<8x128xf32>
    %29 = arith.mulf %24, %28 : vector<8x128xf32>
    %30 = vector.broadcast %8 : vector<1x128xf32> to vector<8x128xf32>
    %31 = arith.mulf %29, %30 : vector<8x128xf32>
    %32 = vector.broadcast %9 : vector<1x128xf32> to vector<8x128xf32>
    %33 = arith.addf %31, %32 : vector<8x128xf32>
    %c0_17 = arith.constant 0 : index
    %c0_18 = arith.constant 0 : index
    %34 = vector.load %arg6[%c0_17, %c0_18] : memref<8x128xf32, #tpu.memory_space<vmem>>, vector<8x128xf32>
    tpu.vector_store %arg6[%c0_17, %c0_18], %33 {strides = array<i32>} : memref<8x128xf32, #tpu.memory_space<vmem>>, vector<8x128xf32>,
    return
  }
  func.func @transform_0(%arg0: i32) -> (i32, i32) {
    %c0_i32 = arith.constant 0 : i32
    %c0_i32_0 = arith.constant 0 : i32
    return %arg0, %c0_i32 : i32, i32
  }
  func.func @transform_1(%arg0: i32) -> (i32, i32) {
    %c0_i32 = arith.constant 0 : i32
    %c0_i32_0 = arith.constant 0 : i32
    %c0_i32_1 = arith.constant 0 : i32
    return %c0_i32, %c0_i32_0 : i32, i32
  }
  func.func @transform_2(%arg0: i32) -> (i32, i32) {
    %c0_i32 = arith.constant 0 : i32
    %c0_i32_0 = arith.constant 0 : i32
    %c0_i32_1 = arith.constant 0 : i32
    return %c0_i32, %c0_i32_0 : i32, i32
  }
  func.func @transform_3(%arg0: i32) -> (i32, i32) {
    %c0_i32 = arith.constant 0 : i32
    %c0_i32_0 = arith.constant 0 : i32
    %c0_i32_1 = arith.constant 0 : i32
    return %c0_i32, %c0_i32_0 : i32, i32
  }
  func.func @transform_4(%arg0: i32) -> (i32, i32) {
    %c0_i32 = arith.constant 0 : i32
    %c0_i32_0 = arith.constant 0 : i32
    %c0_i32_1 = arith.constant 0 : i32
    return %c0_i32, %c0_i32_0 : i32, i32
  }
  func.func @transform_5(%arg0: i32) -> (i32, i32) {
    %c0_i32 = arith.constant 0 : i32
    %c0_i32_0 = arith.constant 0 : i32
    return %arg0, %c0_i32 : i32, i32
  }
}

module attributes {stable_mosaic.version = 11 : i64} {
  func.func @ffn_addnorm_kernel(%arg0: i32, %arg1: memref<8x128xf32, #tpu.memory_space<vmem>>, %arg2: memref<128x128xf32, #tpu.memory_space<vmem>>, %arg3: memref<128x128xf32, #tpu.memory_space<vmem>>, %arg4: memref<1x128xf32, #tpu.memory_space<vmem>>, %arg5: memref<1x128xf32, #tpu.memory_space<vmem>>, %arg6: memref<8x128xf32, #tpu.memory_space<vmem>>) attributes {dimension_semantics = [#tpu.dimension_semantics<parallel>], iteration_bounds = array<i64: 2>, scalar_prefetch = 0 : i64, scratch_operands = 0 : i64, tpu.core_type = #tpu.core_type<tc>, window_params = [{transform_indices = @transform_0, window_bounds = array<i64: 8, 128>}, {pipeline_mode = #tpu.pipeline_mode<synchronous>, transform_indices = @transform_1, window_bounds = array<i64: 128, 128>}, {pipeline_mode = #tpu.pipeline_mode<synchronous>, transform_indices = @transform_2, window_bounds = array<i64: 128, 128>}, {pipeline_mode = #tpu.pipeline_mode<synchronous>, transform_indices = @transform_3, window_bounds = array<i64: 1, 128>}, {pipeline_mode = #tpu.pipeline_mode<synchronous>, transform_indices = @transform_4, window_bounds = array<i64: 1, 128>}, {transform_indices = @transform_5, window_bounds = array<i64: 8, 128>}]} {
    %c0 = arith.constant 0 : index
    %c0_0 = arith.constant 0 : index
    %0 = vector.load %arg1[%c0, %c0_0] : memref<8x128xf32, #tpu.memory_space<vmem>>, vector<8x128xf32>
    %c0_1 = arith.constant 0 : index
    %c0_2 = arith.constant 0 : index
    %1 = vector.load %arg2[%c0_1, %c0_2] : memref<128x128xf32, #tpu.memory_space<vmem>>, vector<128x128xf32>
    %cst = arith.constant dense<0.000000e+00> : vector<8x128xf32>
    %2 = tpu.matmul %0, %1, %cst {dimension_numbers = #tpu.dot_dimension_numbers<[1], [0], [0], [1], [0, 0, 1, 1], [], []>} : vector<8x128xf32>, vector<128x128xf32>, vector<8x128xf32> -> vector<8x128xf32>
    %cst_3 = arith.constant 0.000000e+00 : f32
    %3 = vector.broadcast %cst_3 : f32 to vector<8x128xf32>
    %4 = arith.maximumf %2, %3 : vector<8x128xf32>
    %c0_4 = arith.constant 0 : index
    %c0_5 = arith.constant 0 : index
    %5 = vector.load %arg3[%c0_4, %c0_5] : memref<128x128xf32, #tpu.memory_space<vmem>>, vector<128x128xf32>
    %cst_6 = arith.constant dense<0.000000e+00> : vector<8x128xf32>
    %6 = tpu.matmul %4, %5, %cst_6 {dimension_numbers = #tpu.dot_dimension_numbers<[1], [0], [0], [1], [0, 0, 1, 1], [], []>} : vector<8x128xf32>, vector<128x128xf32>, vector<8x128xf32> -> vector<8x128xf32>
    %7 = arith.addf %6, %0 : vector<8x128xf32>
    %c0_7 = arith.constant 0 : index
    %c0_8 = arith.constant 0 : index
    %8 = vector.load %arg4[%c0_7, %c0_8] : memref<1x128xf32, #tpu.memory_space<vmem>>, vector<1x128xf32>
    %c0_9 = arith.constant 0 : index
    %c0_10 = arith.constant 0 : index
    %9 = vector.load %arg5[%c0_9, %c0_10] : memref<1x128xf32, #tpu.memory_space<vmem>>, vector<1x128xf32>
    %cst_11 = arith.constant dense<0.000000e+00> : vector<8xf32>
    %10 = vector.multi_reduction <add>, %7, %cst_11 [1] : vector<8x128xf32> to vector<8xf32>
    %11 = vector.shape_cast %10 : vector<8xf32> to vector<8x1xf32>
    %12 = arith.mulf %7, %7 : vector<8x128xf32>
    %cst_12 = arith.constant dense<0.000000e+00> : vector<8xf32>
    %13 = vector.multi_reduction <add>, %12, %cst_12 [1] : vector<8x128xf32> to vector<8xf32>
    %14 = vector.shape_cast %13 : vector<8xf32> to vector<8x1xf32>
    %cst_13 = arith.constant 3.125000e-02 : f32
    %15 = vector.broadcast %cst_13 : f32 to vector<8x1xf32>
    %16 = arith.mulf %11, %15 : vector<8x1xf32>
    %cst_14 = arith.constant 3.125000e-02 : f32
    %17 = vector.broadcast %cst_14 : f32 to vector<8x1xf32>
    %18 = arith.mulf %14, %17 : vector<8x1xf32>
    %19 = arith.mulf %16, %16 : vector<8x1xf32>
    %20 = arith.subf %18, %19 : vector<8x1xf32>
    %cst_15 = arith.constant 0.000000e+00 : f32
    %21 = vector.broadcast %cst_15 : f32 to vector<8x1xf32>
    %22 = arith.maximumf %20, %21 : vector<8x1xf32>
    %23 = vector.broadcast %16 : vector<8x1xf32> to vector<8x128xf32>
    %24 = arith.subf %7, %23 : vector<8x128xf32>
    %cst_16 = arith.constant 9.99999974E-6 : f32
    %25 = vector.broadcast %cst_16 : f32 to vector<8x1xf32>
    %26 = arith.addf %22, %25 : vector<8x1xf32>
    %27 = math.rsqrt %26 : vector<8x1xf32>
    %28 = vector.broadcast %27 : vector<8x1xf32> to vector<8x128xf32>
    %29 = arith.mulf %24, %28 : vector<8x128xf32>
    %30 = vector.broadcast %8 : vector<1x128xf32> to vector<8x128xf32>
    %31 = arith.mulf %29, %30 : vector<8x128xf32>
    %32 = vector.broadcast %9 : vector<1x128xf32> to vector<8x128xf32>
    %33 = arith.addf %31, %32 : vector<8x128xf32>
    %c0_17 = arith.constant 0 : index
    %c0_18 = arith.constant 0 : index
    %34 = vector.load %arg6[%c0_17, %c0_18] : memref<8x128xf32, #tpu.memory_space<vmem>>, vector<8x128xf32>
    tpu.vector_store %arg6[%c0_17, %c0_18], %33 {strides = array<i32>} : memref<8x128xf32, #tpu.memory_space<vmem>>, vector<8x128xf32>,
    return
  }
  func.func @transform_0(%arg0: i32) -> (i32, i32) {
    %c0_i32 = arith.constant 0 : i32
    %c0_i32_0 = arith.constant 0 : i32
    return %arg0, %c0_i32 : i32, i32
  }
  func.func @transform_1(%arg0: i32) -> (i32, i32) {
    %c0_i32 = arith.constant 0 : i32
    %c0_i32_0 = arith.constant 0 : i32
    %c0_i32_1 = arith.constant 0 : i32
    return %c0_i32, %c0_i32_0 : i32, i32
  }
  func.func @transform_2(%arg0: i32) -> (i32, i32) {
    %c0_i32 = arith.constant 0 : i32
    %c0_i32_0 = arith.constant 0 : i32
    %c0_i32_1 = arith.constant 0 : i32
    return %c0_i32, %c0_i32_0 : i32, i32
  }
  func.func @transform_3(%arg0: i32) -> (i32, i32) {
    %c0_i32 = arith.constant 0 : i32
    %c0_i32_0 = arith.constant 0 : i32
    %c0_i32_1 = arith.constant 0 : i32
    return %c0_i32, %c0_i32_0 : i32, i32
  }
  func.func @transform_4(%arg0: i32) -> (i32, i32) {
    %c0_i32 = arith.constant 0 : i32
    %c0_i32_0 = arith.constant 0 : i32
    %c0_i32_1 = arith.constant 0 : i32
    return %c0_i32, %c0_i32_0 : i32, i32
  }
  func.func @transform_5(%arg0: i32) -> (i32, i32) {
    %c0_i32 = arith.constant 0 : i32
    %c0_i32_0 = arith.constant 0 : i32
    return %arg0, %c0_i32 : i32, i32
  }
}

</mosaic_0001>

<llo_original>
// kernel: tpu_custom_call.1
$region0: #{tpu_custom_call.1}
  #allocation0 [shape = 'u32[]', space=smem, size = 0x4, offset = 0x4, fixed_abs, tag = 'smem constant byte address 0x4 - core index']
  #allocation1 [shape = 'u32[144,128]{1,0:T(1,128)}', space=vmem, size = 0x12000, scoped, tag = 'internal scratch']
  %s0 = inlined_call_operand.hbm [shape: f32[16,128], index: 0, kind: input, shape index: {}]
  %s1 = inlined_call_operand.hbm [shape: f32[128,128], index: 1, kind: input, shape index: {}]
  %s2 = inlined_call_operand.hbm [shape: f32[128,128], index: 2, kind: input, shape index: {}]
  %s3 = inlined_call_operand.vmem [shape: f32[1,128], index: 3, kind: input, shape index: {}]
  %s4 = inlined_call_operand.vmem [shape: f32[1,128], index: 4, kind: input, shape index: {}]
  %s5 = inlined_call_operand.hbm [shape: f32[16,128], index: 5, kind: output, shape index: {}]
  %s6 = sld [smem:[#allocation0]]
  $region65: #{tpu_custom_call.1} parent=0
    _
  %s8 = ssub.s32 1, %s6
  %s9 = scalar_select 0, %s8, %s6
  $region1: #{tpu_custom_call.1} parent=0
    #allocation2 [shape = 'u8[8192]{0}', space=vmem, size = 0x2000, scoped, tag = 'input window, operand 0']
    #allocation3 [shape = 's32[2]{0}', space=sflag, size = 0x8, scoped, tag = 'scoped memory for tpu_custom_call.1']
    #allocation4 [shape = 's32[2]{0}', space=sflag, size = 0x8, scoped, tag = 'scoped memory for tpu_custom_call.1']
    #allocation5 [shape = 'u8[65536]{0}', space=vmem, size = 0x10000, scoped, tag = 'input window, operand 1, single buffered']
    #allocation6 [shape = 's32[1]{0}', space=sflag, size = 0x4, scoped, tag = 'scoped memory for tpu_custom_call.1']
    #allocation7 [shape = 'u8[65536]{0}', space=vmem, size = 0x10000, scoped, tag = 'input window, operand 2, single buffered']
    #allocation8 [shape = 'u8[8192]{0}', space=vmem, size = 0x2000, scoped, tag = 'output window, operand 0']
    %10 = vsyncpa [#allocation3], 0
    %s11 = scalar_lea.sflag [#allocation3], 1
    %12 = vsyncpa %s11, 0
    %13 = vsyncpa [#allocation6], 0
    %14 = vsyncpa [#allocation4], 0
    %s15 = scalar_lea.sflag [#allocation4], 1
    %16 = vsyncpa %s15, 0
    loop: start=0, step=1, limit=4
    $region2: #{tpu_custom_call.1} parent=1 // loop_pre_header
      _
    $region3: #{tpu_custom_call.1} parent=1 // loop_header
      %s18 = sphi 0, %s22
      %p19 = scmp.ge.s32.totalorder %s18, 4
      %s28 = sphi 0, %s30
      %s31 = sphi 0, %s28
      %s32 = sphi 0, %s31
      %s48 = sphi 0, %s32
      %s52 = sphi 0, %s52
      %s54 = sphi 0, %s52
      %s55 = sphi 0, %s54
      %s69 = sphi 0, %s55
      %s73 = sphi 0, %s73
      %s75 = sphi 0, %s73
      %s76 = sphi 0, %s75
      %s90 = sphi 0, %s76
      %s94 = sphi 0, %s94
      %s96 = sphi 0, %s94
      %s97 = sphi 0, %s96
      %s111 = sphi 0, %s97
      %s115 = sphi 0, %s115
      %s117 = sphi 0, %s115
      %s118 = sphi 0, %s117
      %s132 = sphi 0, %s118
      %s138 = sphi 0, %s140
      %s141 = sphi 0, %s138
      %s142 = sphi 0, %s141
      %s158 = sphi 0, %s142
    $region4: #{tpu_custom_call.1} parent=1 // loop_header_branch
      %21 = sbr.rel (%p19) target = $region8
    $region5: #{tpu_custom_call.1} parent=1 // loop_body
      %s23 = ssub.s32 %s18, 1
      %s24 = ssub.s32 %s18, 2
      %s25 = sadd.s32 %s18, 1
      %s26 = ssub.s32 %s18, %s25
      %p27 = scmp.eq.s32.totalorder %s26, 0
      %s29 = sadd.s32 %s28, 1
      %s30 = scalar_select %p27, %s28, %s29
      %p33 = pneg %p27
      %p34 = scmp.eq.s32.totalorder %s18, 1
      %p35 = por %p33, %p34
      %p36 = scmp.ne.s32.totalorder %s28, %s31
      %p37 = scmp.eq.s32.totalorder %s18, 0
      %p38 = por %p36, %p37
      %p39 = scmp.ne.s32.totalorder %s28, %s31
      %p40 = scmp.eq.s32.totalorder %s23, 1
      %p41 = por %p39, %p40
      %p42 = scmp.ne.s32.totalorder %s31, %s32
      %p43 = scmp.eq.s32.totalorder %s23, 0
      %p44 = por %p42, %p43
      %p45 = scmp.ne.s32.totalorder %s31, %s32
      %p46 = scmp.eq.s32.totalorder %s24, 1
      %p47 = por %p45, %p46
      %p49 = scmp.ne.s32.totalorder %s32, %s48
      %p50 = scmp.eq.s32.totalorder %s24, 0
      %p51 = por %p49, %p50
      %s53 = sadd.s32 %s52, 1
      %p56 = scmp.eq.s32.totalorder %s18, 1
      %p57 = scmp.ne.s32.totalorder %s52, %s54
      %p58 = scmp.eq.s32.totalorder %s18, 0
      %p59 = por %p57, %p58
      %p60 = scmp.ne.s32.totalorder %s52, %s54
      %p61 = scmp.eq.s32.totalorder %s23, 1
      %p62 = por %p60, %p61
      %p63 = scmp.ne.s32.totalorder %s54, %s55
      %p64 = scmp.eq.s32.totalorder %s23, 0
      %p65 = por %p63, %p64
      %p66 = scmp.ne.s32.totalorder %s54, %s55
      %p67 = scmp.eq.s32.totalorder %s24, 1
      %p68 = por %p66, %p67
      %p70 = scmp.ne.s32.totalorder %s55, %s69
      %p71 = scmp.eq.s32.totalorder %s24, 0
      %p72 = por %p70, %p71
      %s74 = sadd.s32 %s73, 1
      %p77 = scmp.eq.s32.totalorder %s18, 1
      %p78 = scmp.ne.s32.totalorder %s73, %s75
      %p79 = scmp.eq.s32.totalorder %s18, 0
      %p80 = por %p78, %p79
      %p81 = scmp.ne.s32.totalorder %s73, %s75
      %p82 = scmp.eq.s32.totalorder %s23, 1
      %p83 = por %p81, %p82
      %p84 = scmp.ne.s32.totalorder %s75, %s76
      %p85 = scmp.eq.s32.totalorder %s23, 0
      %p86 = por %p84, %p85
      %p87 = scmp.ne.s32.totalorder %s75, %s76
      %p88 = scmp.eq.s32.totalorder %s24, 1
      %p89 = por %p87, %p88
      %p91 = scmp.ne.s32.totalorder %s76, %s90
      %p92 = scmp.eq.s32.totalorder %s24, 0
      %p93 = por %p91, %p92
      %s95 = sadd.s32 %s94, 1
      %p98 = scmp.eq.s32.totalorder %s18, 1
      %p99 = scmp.ne.s32.totalorder %s94, %s96
      %p100 = scmp.eq.s32.totalorder %s18, 0
      %p101 = por %p99, %p100
      %p102 = scmp.ne.s32.totalorder %s94, %s96
      %p103 = scmp.eq.s32.totalorder %s23, 1
      %p104 = por %p102, %p103
      %p105 = scmp.ne.s32.totalorder %s96, %s97
      %p106 = scmp.eq.s32.totalorder %s23, 0
      %p107 = por %p105, %p106
      %p108 = scmp.ne.s32.totalorder %s96, %s97
      %p109 = scmp.eq.s32.totalorder %s24, 1
      %p110 = por %p108, %p109
      %p112 = scmp.ne.s32.totalorder %s97, %s111
      %p113 = scmp.eq.s32.totalorder %s24, 0
      %p114 = por %p112, %p113
      %s116 = sadd.s32 %s115, 1
      %p119 = scmp.eq.s32.totalorder %s18, 1
      %p120 = scmp.ne.s32.totalorder %s115, %s117
      %p121 = scmp.eq.s32.totalorder %s18, 0
      %p122 = por %p120, %p121
      %p123 = scmp.ne.s32.totalorder %s115, %s117
      %p124 = scmp.eq.s32.totalorder %s23, 1
      %p125 = por %p123, %p124
      %p126 = scmp.ne.s32.totalorder %s117, %s118
      %p127 = scmp.eq.s32.totalorder %s23, 0
      %p128 = por %p126, %p127
      %p129 = scmp.ne.s32.totalorder %s117, %s118
      %p130 = scmp.eq.s32.totalorder %s24, 1
      %p131 = por %p129, %p130
      %p133 = scmp.ne.s32.totalorder %s118, %s132
      %p134 = scmp.eq.s32.totalorder %s24, 0
      %p135 = por %p133, %p134
      %s136 = ssub.s32 %s18, %s25
      %p137 = scmp.eq.s32.totalorder %s136, 0
      %s139 = sadd.s32 %s138, 1
      %s140 = scalar_select %p137, %s138, %s139
      %p143 = pneg %p137
      %p144 = scmp.eq.s32.totalorder %s18, 1
      %p145 = por %p143, %p144
      %p146 = scmp.ne.s32.totalorder %s138, %s141
      %p147 = scmp.eq.s32.totalorder %s18, 0
      %p148 = por %p146, %p147
      %p149 = scmp.ne.s32.totalorder %s138, %s141
      %p150 = scmp.eq.s32.totalorder %s23, 1
      %p151 = por %p149, %p150
      %p152 = scmp.ne.s32.totalorder %s141, %s142
      %p153 = scmp.eq.s32.totalorder %s23, 0
      %p154 = por %p152, %p153
      %p155 = scmp.ne.s32.totalorder %s141, %s142
      %p156 = scmp.eq.s32.totalorder %s24, 1
      %p157 = por %p155, %p156
      %p159 = scmp.ne.s32.totalorder %s142, %s158
      %p160 = scmp.eq.s32.totalorder %s24, 0
      %p161 = por %p159, %p160
      %p162 = scmp.le.s32.totalorder 1, %s18
      %p163 = scmp.lt.s32.totalorder %s18, 3
      %p164 = pnand %p162, %p163
      %p165 = pneg %p164
      // Predicated region
      $region9: #{tpu_custom_call.1} parent=5 // pred_check
        _
      $region10: #{tpu_custom_call.1} parent=5 // pred_check_branch
        %167 = sbr.rel (%p164) target = $region12
      $region11: #{tpu_custom_call.1} parent=5 // pred_region
        %s168 = ssub.s32 %s18, 1
        // Predicated region
        $region13: #{tpu_custom_call.1} parent=11 // pred_check
          %p169 = pneg %p65
        $region14: #{tpu_custom_call.1} parent=11 // pred_check_branch
          %171 = sbr.rel (%p169) target = $region16
        $region15: #{tpu_custom_call.1} parent=11 // pred_region
          %s173 = ssub.s32 2048, 2048
          %174 = vsyncadd [#allocation6], %s173
          %s175 = sshll.u32 [#allocation5], 4
          %s176 = int_to_ptr.vmem [resolvable:$true] %s175
          %181 = dma.hbm_to_vmem [thread:$0]  %s1, 2048, %s176, [#allocation6], 128, 128, 8
        $region16: #{tpu_custom_call.1} parent=11 // pred_fallthru
          _
        // Predicated region
        $region17: #{tpu_custom_call.1} parent=11 // pred_check
          %p182 = pneg %p86
        $region18: #{tpu_custom_call.1} parent=11 // pred_check_branch
          %184 = sbr.rel (%p182) target = $region20
        $region19: #{tpu_custom_call.1} parent=11 // pred_region
          %s186 = ssub.s32 2048, 2048
          %187 = vsyncadd [#allocation6], %s186
          %s188 = sshll.u32 [#allocation7], 4
          %s189 = int_to_ptr.vmem [resolvable:$true] %s188
          %194 = dma.hbm_to_vmem [thread:$0]  %s2, 2048, %s189, [#allocation6], 128, 128, 8
        $region20: #{tpu_custom_call.1} parent=11 // pred_fallthru
          _
        // Predicated region
        $region21: #{tpu_custom_call.1} parent=11 // pred_check
          %p195 = pneg %p107
        $region22: #{tpu_custom_call.1} parent=11 // pred_check_branch
          %197 = sbr.rel (%p195) target = $region24
        $region23: #{tpu_custom_call.1} parent=11 // pred_region
          _
        $region24: #{tpu_custom_call.1} parent=11 // pred_fallthru
          _
        // Predicated region
        $region25: #{tpu_custom_call.1} parent=11 // pred_check
          %p198 = pneg %p128
        $region26: #{tpu_custom_call.1} parent=11 // pred_check_branch
          %200 = sbr.rel (%p198) target = $region28
        $region27: #{tpu_custom_call.1} parent=11 // pred_region
          _
        $region28: #{tpu_custom_call.1} parent=11 // pred_fallthru
          _
      $region12: #{tpu_custom_call.1} parent=5 // pred_fallthru
        _
      %p201 = scmp.lt.s32.totalorder %s18, 2
      // Predicated region
      $region29: #{tpu_custom_call.1} parent=5 // pred_check
        %p202 = pneg %p201
      $region30: #{tpu_custom_call.1} parent=5 // pred_check_branch
        %204 = sbr.rel (%p202) target = $region32
      $region31: #{tpu_custom_call.1} parent=5 // pred_region
        // Predicated region
        $region33: #{tpu_custom_call.1} parent=31 // pred_check
          %p205 = pneg %p38
        $region34: #{tpu_custom_call.1} parent=31 // pred_check_branch
          %207 = sbr.rel (%p205) target = $region36
        $region35: #{tpu_custom_call.1} parent=31 // pred_region
          %s208 = sand.u32 %s28, 1
          %s209 = scalar_lea.sflag [#allocation3], %s208
          %s210 = sand.u32 %s28, 1
          %s211 = smul.addr %s210, 8
          %s212 = scalar_lea.vmem [#allocation2], %s211
          %s214 = ssub.s32 128, 128
          %215 = vsyncadd %s209, %s214
          %s216 = smul.addr %s18, 128
          %s217 = scalar_lea.hbm %s0, %s216
          %s219 = sshll.u32 %s212, 4
          %s220 = int_to_ptr.vmem [resolvable:$true] %s219
          %222 = dma.hbm_to_vmem [thread:$0]  %s217, 128, %s220, %s209
        $region36: #{tpu_custom_call.1} parent=31 // pred_fallthru
          _
      $region32: #{tpu_custom_call.1} parent=5 // pred_fallthru
        _
      %p223 = scmp.le.s32.totalorder 1, %s18
      %p224 = scmp.lt.s32.totalorder %s18, 3
      %p225 = pnand %p223, %p224
      %p226 = pneg %p225
      // Predicated region
      $region37: #{tpu_custom_call.1} parent=5 // pred_check
        _
      $region38: #{tpu_custom_call.1} parent=5 // pred_check_branch
        %228 = sbr.rel (%p225) target = $region40
      $region39: #{tpu_custom_call.1} parent=5 // pred_region
        %s229 = ssub.s32 %s18, 1
        %s230 = sand.u32 %s31, 1
        %s231 = scalar_lea.sflag [#allocation3], %s230
        %s232 = sand.u32 %s31, 1
        %s233 = smul.addr %s232, 8
        %s234 = scalar_lea.vmem [#allocation2], %s233
        // Predicated region
        $region41: #{tpu_custom_call.1} parent=39 // pred_check
          %p235 = pneg %p44
        $region42: #{tpu_custom_call.1} parent=39 // pred_check_branch
          %237 = sbr.rel (%p235) target = $region44
        $region43: #{tpu_custom_call.1} parent=39 // pred_region
          %238 = dma.done %s231, 128
        $region44: #{tpu_custom_call.1} parent=39 // pred_fallthru
          _
        // Predicated region
        $region45: #{tpu_custom_call.1} parent=39 // pred_check
          %p239 = pneg %p65
        $region46: #{tpu_custom_call.1} parent=39 // pred_check_branch
          %241 = sbr.rel (%p239) target = $region48
        $region47: #{tpu_custom_call.1} parent=39 // pred_region
          %242 = dma.done [#allocation6], 2048
        $region48: #{tpu_custom_call.1} parent=39 // pred_fallthru
          _
        // Predicated region
        $region49: #{tpu_custom_call.1} parent=39 // pred_check
          %p243 = pneg %p86
        $region50: #{tpu_custom_call.1} parent=39 // pred_check_branch
          %245 = sbr.rel (%p243) target = $region52
        $region51: #{tpu_custom_call.1} parent=39 // pred_region
          %246 = dma.done [#allocation6], 2048
        $region52: #{tpu_custom_call.1} parent=39 // pred_fallthru
          _
        %s247 = sand.u32 %s31, 1
        %s248 = scalar_lea.sflag [#allocation3], %s247
        %s249 = sand.u32 %s31, 1
        %s250 = smul.addr %s249, 8
        %s251 = scalar_lea.vmem [#allocation2], %s250
        %p252 = pneg %p44
        %p253 = pneg %p41
        %p254 = pneg %p65
        %p255 = pneg %p62
        %p256 = pneg %p86
        %p257 = pneg %p83
        %p258 = pneg %p107
        %p259 = pneg %p104
        %p260 = pneg %p128
        %p261 = pneg %p125
        %p262 = pneg %p154
        %p263 = pneg %p151
        %s264 = sand.u32 %s141, 1
        %s265 = scalar_lea.sflag [#allocation4], %s264
        %s266 = sand.u32 %s141, 1
        %s267 = smul.addr %s266, 8
        %s268 = scalar_lea.vmem [#allocation8], %s267
        %v269 = vld [vmem:[%s234] sm:$0xff]
        %v270 = vld [vmem:[#allocation5] sm:$0xff]
        %v271 = vld [vmem:[#allocation5 + $0x8] sm:$0xff]
        %v272 = vld [vmem:[#allocation5 + $0x10] sm:$0xff]
        %v273 = vld [vmem:[#allocation5 + $0x18] sm:$0xff]
        %v274 = vld [vmem:[#allocation5 + $0x20] sm:$0xff]
        %v275 = vld [vmem:[#allocation5 + $0x28] sm:$0xff]
        %v276 = vld [vmem:[#allocation5 + $0x30] sm:$0xff]
        %v277 = vld [vmem:[#allocation5 + $0x38] sm:$0xff]
        %v278 = vld [vmem:[#allocation5 + $0x40] sm:$0xff]
        %v279 = vld [vmem:[#allocation5 + $0x48] sm:$0xff]
        %v280 = vld [vmem:[#allocation5 + $0x50] sm:$0xff]
        %v281 = vld [vmem:[#allocation5 + $0x58] sm:$0xff]
        %v282 = vld [vmem:[#allocation5 + $0x60] sm:$0xff]
        %v283 = vld [vmem:[#allocation5 + $0x68] sm:$0xff]
        %v284 = vld [vmem:[#allocation5 + $0x70] sm:$0xff]
        %v285 = vld [vmem:[#allocation5 + $0x78] sm:$0xff]
        %286 = vmatprep.subr.mxu0 0.0
        %287 = vmatpush1.msra.mxu0 %v270
        %288 = vmatprep.subr.mxu0 0.0
        %289 = vmatpush1.msra.mxu0 %v271
        %290 = vmatprep.subr.mxu0 0.0
        %291 = vmatpush1.msra.mxu0 %v272
        %292 = vmatprep.subr.mxu0 0.0
        %293 = vmatpush1.msra.mxu0 %v273
        %294 = vmatprep.subr.mxu0 0.0
        %295 = vmatpush1.msra.mxu0 %v274
        %296 = vmatprep.subr.mxu0 0.0
        %297 = vmatpush1.msra.mxu0 %v275
        %298 = vmatprep.subr.mxu0 0.0
        %299 = vmatpush1.msra.mxu0 %v276
        %300 = vmatprep.subr.mxu0 0.0
        %301 = vmatpush1.msra.mxu0 %v277
        %302 = vmatprep.subr.mxu0 0.0
        %303 = vmatpush1.msra.mxu0 %v278
        %304 = vmatprep.subr.mxu0 0.0
        %305 = vmatpush1.msra.mxu0 %v279
        %306 = vmatprep.subr.mxu0 0.0
        %307 = vmatpush1.msra.mxu0 %v280
        %308 = vmatprep.subr.mxu0 0.0
        %309 = vmatpush1.msra.mxu0 %v281
        %310 = vmatprep.subr.mxu0 0.0
        %311 = vmatpush1.msra.mxu0 %v282
        %312 = vmatprep.subr.mxu0 0.0
        %313 = vmatpush1.msra.mxu0 %v283
        %314 = vmatprep.subr.mxu0 0.0
        %315 = vmatpush1.msra.mxu0 %v284
        %316 = vmatprep.subr.mxu0 0.0
        %317 = vmatpush1.msra.mxu0 %v285
        %318 = vmatprep.subr.mxu0 0.0
        %319 = vmatpush1.msra.mxu0 0.0
        %320 = vmatprep.subr.mxu0 0.0
        %321 = vmatpush1.msra.mxu0 0.0
        %322 = vmatprep.subr.mxu0 0.0
        %323 = vmatpush1.msra.mxu0 0.0
        %324 = vmatprep.subr.mxu0 0.0
        %325 = vmatpush1.msra.mxu0 0.0
        %326 = vmatprep.subr.mxu0 0.0
        %327 = vmatpush1.msra.mxu0 0.0
        %328 = vmatprep.subr.mxu0 0.0
        %329 = vmatpush1.msra.mxu0 0.0
        %330 = vmatprep.subr.mxu0 0.0
        %331 = vmatpush1.msra.mxu0 0.0
        %332 = vmatprep.subr.mxu0 0.0
        %333 = vmatpush1.msra.mxu0 0.0
        %334 = vmatprep.subr.mxu0 0.0
        %335 = vmatpush1.msra.mxu0 0.0
        %336 = vmatprep.subr.mxu0 0.0
        %337 = vmatpush1.msra.mxu0 0.0
        %338 = vmatprep.subr.mxu0 0.0
        %339 = vmatpush1.msra.mxu0 0.0
        %340 = vmatprep.subr.mxu0 0.0
        %341 = vmatpush1.msra.mxu0 0.0
        %342 = vmatprep.subr.mxu0 0.0
        %343 = vmatpush1.msra.mxu0 0.0
        %344 = vmatprep.subr.mxu0 0.0
        %345 = vmatpush1.msra.mxu0 0.0
        %346 = vmatprep.subr.mxu0 0.0
        %347 = vmatpush1.msra.mxu0 0.0
        %348 = vmatprep.subr.mxu0 0.0
        %349 = vmatpush1.msra.mxu0 0.0
        %350 = vmatprep.mubr.f32.mxu0 0.0
        %351 = vmatmul.mubr.f32.gmra.mrb[0].mxu0 %v269
        %v352 = vpop.f32.mrb[0].mxu0
        %v353 = vadd.f32 0.0, %v352
        %v354 = vpop.f32.mrb[0].mxu0
        %355 = vdwg.mxu0
        %v356 = vmax.f32 %v353, 0.0
        %v357 = vld [vmem:[#allocation7] sm:$0xff]
        %v358 = vld [vmem:[#allocation7 + $0x8] sm:$0xff]
        %v359 = vld [vmem:[#allocation7 + $0x10] sm:$0xff]
        %v360 = vld [vmem:[#allocation7 + $0x18] sm:$0xff]
        %v361 = vld [vmem:[#allocation7 + $0x20] sm:$0xff]
        %v362 = vld [vmem:[#allocation7 + $0x28] sm:$0xff]
        %v363 = vld [vmem:[#allocation7 + $0x30] sm:$0xff]
        %v364 = vld [vmem:[#allocation7 + $0x38] sm:$0xff]
        %v365 = vld [vmem:[#allocation7 + $0x40] sm:$0xff]
        %v366 = vld [vmem:[#allocation7 + $0x48] sm:$0xff]
        %v367 = vld [vmem:[#allocation7 + $0x50] sm:$0xff]
        %v368 = vld [vmem:[#allocation7 + $0x58] sm:$0xff]
        %v369 = vld [vmem:[#allocation7 + $0x60] sm:$0xff]
        %v370 = vld [vmem:[#allocation7 + $0x68] sm:$0xff]
        %v371 = vld [vmem:[#allocation7 + $0x70] sm:$0xff]
        %v372 = vld [vmem:[#allocation7 + $0x78] sm:$0xff]
        %373 = vmatprep.subr.mxu0 0.0
        %374 = vmatpush1.msra.mxu0 %v357
        %375 = vmatprep.subr.mxu0 0.0
        %376 = vmatpush1.msra.mxu0 %v358
        %377 = vmatprep.subr.mxu0 0.0
        %378 = vmatpush1.msra.mxu0 %v359
        %379 = vmatprep.subr.mxu0 0.0
        %380 = vmatpush1.msra.mxu0 %v360
        %381 = vmatprep.subr.mxu0 0.0
        %382 = vmatpush1.msra.mxu0 %v361
        %383 = vmatprep.subr.mxu0 0.0
        %384 = vmatpush1.msra.mxu0 %v362
        %385 = vmatprep.subr.mxu0 0.0
        %386 = vmatpush1.msra.mxu0 %v363
        %387 = vmatprep.subr.mxu0 0.0
        %388 = vmatpush1.msra.mxu0 %v364
        %389 = vmatprep.subr.mxu0 0.0
        %390 = vmatpush1.msra.mxu0 %v365
        %391 = vmatprep.subr.mxu0 0.0
        %392 = vmatpush1.msra.mxu0 %v366
        %393 = vmatprep.subr.mxu0 0.0
        %394 = vmatpush1.msra.mxu0 %v367
        %395 = vmatprep.subr.mxu0 0.0
        %396 = vmatpush1.msra.mxu0 %v368
        %397 = vmatprep.subr.mxu0 0.0
        %398 = vmatpush1.msra.mxu0 %v369
        %399 = vmatprep.subr.mxu0 0.0
        %400 = vmatpush1.msra.mxu0 %v370
        %401 = vmatprep.subr.mxu0 0.0
        %402 = vmatpush1.msra.mxu0 %v371
        %403 = vmatprep.subr.mxu0 0.0
        %404 = vmatpush1.msra.mxu0 %v372
        %405 = vmatprep.subr.mxu0 0.0
        %406 = vmatpush1.msra.mxu0 0.0
        %407 = vmatprep.subr.mxu0 0.0
        %408 = vmatpush1.msra.mxu0 0.0
        %409 = vmatprep.subr.mxu0 0.0
        %410 = vmatpush1.msra.mxu0 0.0
        %411 = vmatprep.subr.mxu0 0.0
        %412 = vmatpush1.msra.mxu0 0.0
        %413 = vmatprep.subr.mxu0 0.0
        %414 = vmatpush1.msra.mxu0 0.0
        %415 = vmatprep.subr.mxu0 0.0
        %416 = vmatpush1.msra.mxu0 0.0
        %417 = vmatprep.subr.mxu0 0.0
        %418 = vmatpush1.msra.mxu0 0.0
        %419 = vmatprep.subr.mxu0 0.0
        %420 = vmatpush1.msra.mxu0 0.0
        %421 = vmatprep.subr.mxu0 0.0
        %422 = vmatpush1.msra.mxu0 0.0
        %423 = vmatprep.subr.mxu0 0.0
        %424 = vmatpush1.msra.mxu0 0.0
        %425 = vmatprep.subr.mxu0 0.0
        %426 = vmatpush1.msra.mxu0 0.0
        %427 = vmatprep.subr.mxu0 0.0
        %428 = vmatpush1.msra.mxu0 0.0
        %429 = vmatprep.subr.mxu0 0.0
        %430 = vmatpush1.msra.mxu0 0.0
        %431 = vmatprep.subr.mxu0 0.0
        %432 = vmatpush1.msra.mxu0 0.0
        %433 = vmatprep.subr.mxu0 0.0
        %434 = vmatpush1.msra.mxu0 0.0
        %435 = vmatprep.subr.mxu0 0.0
        %436 = vmatpush1.msra.mxu0 0.0
        %437 = vmatprep.mubr.f32.mxu0 0.0
        %438 = vmatmul.mubr.f32.gmra.mrb[0].mxu0 %v356
        %v439 = vpop.f32.mrb[0].mxu0
        %v440 = vadd.f32 %v269, %v439
        %v441 = vpop.f32.mrb[0].mxu0
        %442 = vdwg.mxu0
        %v443 = vld [vmem:[%s3] sm:$0x1]
        %v444 = vld [vmem:[%s4] sm:$0x1]
        %445 = vadd.xlane.f32.xlu0 %v440
        %v446 = vpop.xlane.xlu0 %445
        %v447 = vmul.f32 %v440, %v440
        %448 = vadd.xlane.f32.xlu0 %v447
        %v449 = vpop.xlane.xlu0 %448
        %v450 = vmul.f32 %v446, 0.03125
        %v451 = vmul.f32 %v449, 0.03125
        %v452 = vmul.f32 %v450, %v450
        %v453 = vsub.f32 %v451, %v452
        %v454 = vmax.f32 %v453, 0.0
        %v455 = vsub.f32 %v440, %v450
        %v456 = vadd.f32 %v454, 1e-05
        %v457 = vrsqrt.pop %v456
        %v458 = vmul.f32 %v455, %v457
        %v460 = vlaneseq
        %v461 = vshrl.u32 %v460, 7
        %v462 = vsub.s32 0, %v461
        %v463 = vrot.slane %v443, %v462
        %v465 = vmul.f32 %v458, %v463
        %v467 = vlaneseq
        %v468 = vshrl.u32 %v467, 7
        %v469 = vsub.s32 0, %v468
        %v470 = vrot.slane %v444, %v469
        %v472 = vadd.f32 %v465, %v470
        %473 = vst [vmem:[%s268] sm:$0xff] %v472
        %s474 = sand.u32 %s141, 1
        %s475 = scalar_lea.sflag [#allocation4], %s474
        %s476 = sand.u32 %s141, 1
        %s477 = smul.addr %s476, 8
        %s478 = scalar_lea.vmem [#allocation8], %s477
        // Predicated region
        $region53: #{tpu_custom_call.1} parent=39 // pred_check
          %p479 = pneg %p151
        $region54: #{tpu_custom_call.1} parent=39 // pred_check_branch
          %481 = sbr.rel (%p479) target = $region56
        $region55: #{tpu_custom_call.1} parent=39 // pred_region
          %s483 = ssub.s32 128, 128
          %484 = vsyncadd %s475, %s483
          %s485 = smul.addr %s23, 128
          %s486 = scalar_lea.hbm %s5, %s485
          %s488 = sshll.u32 %s478, 4
          %s489 = int_to_ptr.vmem [resolvable:$true] %s488
          %491 = dma.vmem_to_hbm [thread:$0]  %s489, 128, %s486, %s475
        $region56: #{tpu_custom_call.1} parent=39 // pred_fallthru
          _
      $region40: #{tpu_custom_call.1} parent=5 // pred_fallthru
        _
      %p492 = scmp.le.s32.totalorder 2, %s18
      // Predicated region
      $region57: #{tpu_custom_call.1} parent=5 // pred_check
        %p493 = pneg %p492
      $region58: #{tpu_custom_call.1} parent=5 // pred_check_branch
        %495 = sbr.rel (%p493) target = $region60
      $region59: #{tpu_custom_call.1} parent=5 // pred_region
        %s496 = ssub.s32 %s18, 2
        // Predicated region
        $region61: #{tpu_custom_call.1} parent=59 // pred_check
          %p497 = pneg %p157
        $region62: #{tpu_custom_call.1} parent=59 // pred_check_branch
          %499 = sbr.rel (%p497) target = $region64
        $region63: #{tpu_custom_call.1} parent=59 // pred_region
          %s500 = sand.u32 %s142, 1
          %s501 = scalar_lea.sflag [#allocation4], %s500
          %s502 = sand.u32 %s142, 1
          %s503 = smul.addr %s502, 8
          %s504 = scalar_lea.vmem [#allocation8], %s503
          %505 = dma.done %s501, 128
        $region64: #{tpu_custom_call.1} parent=59 // pred_fallthru
          _
      $region60: #{tpu_custom_call.1} parent=5 // pred_fallthru
        _
    $region6: #{tpu_custom_call.1} parent=1 // loop_footer
      %s22 = sadd.s32 1, %s18
    $region7: #{tpu_custom_call.1} parent=1 // loop_footer_branch
      %17 = sbr.rel target = $region3
    $region8: #{tpu_custom_call.1} parent=1 // loop_exit
      _
    %506 = vsyncpa [#allocation3], 1
    %s507 = scalar_lea.sflag [#allocation3], 1
    %508 = vsyncpa %s507, 1
    %509 = vsyncpa [#allocation6], 1
    %510 = vsyncpa [#allocation4], 1
    %s511 = scalar_lea.sflag [#allocation4], 1
    %512 = vsyncpa %s511, 1

// kernel: tpu_custom_call.1
$region0: #{tpu_custom_call.1}
  #allocation0 [shape = 'u32[]', space=smem, size = 0x4, offset = 0x4, fixed_abs, tag = 'smem constant byte address 0x4 - core index']
  #allocation1 [shape = 'u32[144,128]{1,0:T(1,128)}', space=vmem, size = 0x12000, scoped, tag = 'internal scratch']
  %s0 = inlined_call_operand.hbm [shape: f32[16,128], index: 0, kind: input, shape index: {}]
  %s1 = inlined_call_operand.hbm [shape: f32[128,128], index: 1, kind: input, shape index: {}]
  %s2 = inlined_call_operand.hbm [shape: f32[128,128], index: 2, kind: input, shape index: {}]
  %s3 = inlined_call_operand.vmem [shape: f32[1,128], index: 3, kind: input, shape index: {}]
  %s4 = inlined_call_operand.vmem [shape: f32[1,128], index: 4, kind: input, shape index: {}]
  %s5 = inlined_call_operand.hbm [shape: f32[16,128], index: 5, kind: output, shape index: {}]
  %s6 = sld [smem:[#allocation0]]
  $region65: #{tpu_custom_call.1} parent=0
    _
  %s8 = ssub.s32 1, %s6
  %s9 = scalar_select 0, %s8, %s6
  $region1: #{tpu_custom_call.1} parent=0
    #allocation2 [shape = 'u8[8192]{0}', space=vmem, size = 0x2000, scoped, tag = 'input window, operand 0']
    #allocation3 [shape = 's32[2]{0}', space=sflag, size = 0x8, scoped, tag = 'scoped memory for tpu_custom_call.1']
    #allocation4 [shape = 's32[2]{0}', space=sflag, size = 0x8, scoped, tag = 'scoped memory for tpu_custom_call.1']
    #allocation5 [shape = 'u8[65536]{0}', space=vmem, size = 0x10000, scoped, tag = 'input window, operand 1, single buffered']
    #allocation6 [shape = 's32[1]{0}', space=sflag, size = 0x4, scoped, tag = 'scoped memory for tpu_custom_call.1']
    #allocation7 [shape = 'u8[65536]{0}', space=vmem, size = 0x10000, scoped, tag = 'input window, operand 2, single buffered']
    #allocation8 [shape = 'u8[8192]{0}', space=vmem, size = 0x2000, scoped, tag = 'output window, operand 0']
    %10 = vsyncpa [#allocation3], 0
    %s11 = scalar_lea.sflag [#allocation3], 1
    %12 = vsyncpa %s11, 0
    %13 = vsyncpa [#allocation6], 0
    %14 = vsyncpa [#allocation4], 0
    %s15 = scalar_lea.sflag [#allocation4], 1
    %16 = vsyncpa %s15, 0
    loop: start=0, step=1, limit=4
    $region2: #{tpu_custom_call.1} parent=1 // loop_pre_header
      _
    $region3: #{tpu_custom_call.1} parent=1 // loop_header
      %s18 = sphi 0, %s22
      %p19 = scmp.ge.s32.totalorder %s18, 4
      %s28 = sphi 0, %s30
      %s31 = sphi 0, %s28
      %s32 = sphi 0, %s31
      %s48 = sphi 0, %s32
      %s52 = sphi 0, %s52
      %s54 = sphi 0, %s52
      %s55 = sphi 0, %s54
      %s69 = sphi 0, %s55
      %s73 = sphi 0, %s73
      %s75 = sphi 0, %s73
      %s76 = sphi 0, %s75
      %s90 = sphi 0, %s76
      %s94 = sphi 0, %s94
      %s96 = sphi 0, %s94
      %s97 = sphi 0, %s96
      %s111 = sphi 0, %s97
      %s115 = sphi 0, %s115
      %s117 = sphi 0, %s115
      %s118 = sphi 0, %s117
      %s132 = sphi 0, %s118
      %s138 = sphi 0, %s140
      %s141 = sphi 0, %s138
      %s142 = sphi 0, %s141
      %s158 = sphi 0, %s142
    $region4: #{tpu_custom_call.1} parent=1 // loop_header_branch
      %21 = sbr.rel (%p19) target = $region8
    $region5: #{tpu_custom_call.1} parent=1 // loop_body
      %s23 = ssub.s32 %s18, 1
      %s24 = ssub.s32 %s18, 2
      %s25 = sadd.s32 %s18, 1
      %s26 = ssub.s32 %s18, %s25
      %p27 = scmp.eq.s32.totalorder %s26, 0
      %s29 = sadd.s32 %s28, 1
      %s30 = scalar_select %p27, %s28, %s29
      %p33 = pneg %p27
      %p34 = scmp.eq.s32.totalorder %s18, 1
      %p35 = por %p33, %p34
      %p36 = scmp.ne.s32.totalorder %s28, %s31
      %p37 = scmp.eq.s32.totalorder %s18, 0
      %p38 = por %p36, %p37
      %p39 = scmp.ne.s32.totalorder %s28, %s31
      %p40 = scmp.eq.s32.totalorder %s23, 1
      %p41 = por %p39, %p40
      %p42 = scmp.ne.s32.totalorder %s31, %s32
      %p43 = scmp.eq.s32.totalorder %s23, 0
      %p44 = por %p42, %p43
      %p45 = scmp.ne.s32.totalorder %s31, %s32
      %p46 = scmp.eq.s32.totalorder %s24, 1
      %p47 = por %p45, %p46
      %p49 = scmp.ne.s32.totalorder %s32, %s48
      %p50 = scmp.eq.s32.totalorder %s24, 0
      %p51 = por %p49, %p50
      %s53 = sadd.s32 %s52, 1
      %p56 = scmp.eq.s32.totalorder %s18, 1
      %p57 = scmp.ne.s32.totalorder %s52, %s54
      %p58 = scmp.eq.s32.totalorder %s18, 0
      %p59 = por %p57, %p58
      %p60 = scmp.ne.s32.totalorder %s52, %s54
      %p61 = scmp.eq.s32.totalorder %s23, 1
      %p62 = por %p60, %p61
      %p63 = scmp.ne.s32.totalorder %s54, %s55
      %p64 = scmp.eq.s32.totalorder %s23, 0
      %p65 = por %p63, %p64
      %p66 = scmp.ne.s32.totalorder %s54, %s55
      %p67 = scmp.eq.s32.totalorder %s24, 1
      %p68 = por %p66, %p67
      %p70 = scmp.ne.s32.totalorder %s55, %s69
      %p71 = scmp.eq.s32.totalorder %s24, 0
      %p72 = por %p70, %p71
      %s74 = sadd.s32 %s73, 1
      %p77 = scmp.eq.s32.totalorder %s18, 1
      %p78 = scmp.ne.s32.totalorder %s73, %s75
      %p79 = scmp.eq.s32.totalorder %s18, 0
      %p80 = por %p78, %p79
      %p81 = scmp.ne.s32.totalorder %s73, %s75
      %p82 = scmp.eq.s32.totalorder %s23, 1
      %p83 = por %p81, %p82
      %p84 = scmp.ne.s32.totalorder %s75, %s76
      %p85 = scmp.eq.s32.totalorder %s23, 0
      %p86 = por %p84, %p85
      %p87 = scmp.ne.s32.totalorder %s75, %s76
      %p88 = scmp.eq.s32.totalorder %s24, 1
      %p89 = por %p87, %p88
      %p91 = scmp.ne.s32.totalorder %s76, %s90
      %p92 = scmp.eq.s32.totalorder %s24, 0
      %p93 = por %p91, %p92
      %s95 = sadd.s32 %s94, 1
      %p98 = scmp.eq.s32.totalorder %s18, 1
      %p99 = scmp.ne.s32.totalorder %s94, %s96
      %p100 = scmp.eq.s32.totalorder %s18, 0
      %p101 = por %p99, %p100
      %p102 = scmp.ne.s32.totalorder %s94, %s96
      %p103 = scmp.eq.s32.totalorder %s23, 1
      %p104 = por %p102, %p103
      %p105 = scmp.ne.s32.totalorder %s96, %s97
      %p106 = scmp.eq.s32.totalorder %s23, 0
      %p107 = por %p105, %p106
      %p108 = scmp.ne.s32.totalorder %s96, %s97
      %p109 = scmp.eq.s32.totalorder %s24, 1
      %p110 = por %p108, %p109
      %p112 = scmp.ne.s32.totalorder %s97, %s111
      %p113 = scmp.eq.s32.totalorder %s24, 0
      %p114 = por %p112, %p113
      %s116 = sadd.s32 %s115, 1
      %p119 = scmp.eq.s32.totalorder %s18, 1
      %p120 = scmp.ne.s32.totalorder %s115, %s117
      %p121 = scmp.eq.s32.totalorder %s18, 0
      %p122 = por %p120, %p121
      %p123 = scmp.ne.s32.totalorder %s115, %s117
      %p124 = scmp.eq.s32.totalorder %s23, 1
      %p125 = por %p123, %p124
      %p126 = scmp.ne.s32.totalorder %s117, %s118
      %p127 = scmp.eq.s32.totalorder %s23, 0
      %p128 = por %p126, %p127
      %p129 = scmp.ne.s32.totalorder %s117, %s118
      %p130 = scmp.eq.s32.totalorder %s24, 1
      %p131 = por %p129, %p130
      %p133 = scmp.ne.s32.totalorder %s118, %s132
      %p134 = scmp.eq.s32.totalorder %s24, 0
      %p135 = por %p133, %p134
      %s136 = ssub.s32 %s18, %s25
      %p137 = scmp.eq.s32.totalorder %s136, 0
      %s139 = sadd.s32 %s138, 1
      %s140 = scalar_select %p137, %s138, %s139
      %p143 = pneg %p137
      %p144 = scmp.eq.s32.totalorder %s18, 1
      %p145 = por %p143, %p144
      %p146 = scmp.ne.s32.totalorder %s138, %s141
      %p147 = scmp.eq.s32.totalorder %s18, 0
      %p148 = por %p146, %p147
      %p149 = scmp.ne.s32.totalorder %s138, %s141
      %p150 = scmp.eq.s32.totalorder %s23, 1
      %p151 = por %p149, %p150
      %p152 = scmp.ne.s32.totalorder %s141, %s142
      %p153 = scmp.eq.s32.totalorder %s23, 0
      %p154 = por %p152, %p153
      %p155 = scmp.ne.s32.totalorder %s141, %s142
      %p156 = scmp.eq.s32.totalorder %s24, 1
      %p157 = por %p155, %p156
      %p159 = scmp.ne.s32.totalorder %s142, %s158
      %p160 = scmp.eq.s32.totalorder %s24, 0
      %p161 = por %p159, %p160
      %p162 = scmp.le.s32.totalorder 1, %s18
      %p163 = scmp.lt.s32.totalorder %s18, 3
      %p164 = pnand %p162, %p163
      %p165 = pneg %p164
      // Predicated region
      $region9: #{tpu_custom_call.1} parent=5 // pred_check
        _
      $region10: #{tpu_custom_call.1} parent=5 // pred_check_branch
        %167 = sbr.rel (%p164) target = $region12
      $region11: #{tpu_custom_call.1} parent=5 // pred_region
        %s168 = ssub.s32 %s18, 1
        // Predicated region
        $region13: #{tpu_custom_call.1} parent=11 // pred_check
          %p169 = pneg %p65
        $region14: #{tpu_custom_call.1} parent=11 // pred_check_branch
          %171 = sbr.rel (%p169) target = $region16
        $region15: #{tpu_custom_call.1} parent=11 // pred_region
          %s173 = ssub.s32 2048, 2048
          %174 = vsyncadd [#allocation6], %s173
          %s175 = sshll.u32 [#allocation5], 4
          %s176 = int_to_ptr.vmem [resolvable:$true] %s175
          %181 = dma.hbm_to_vmem [thread:$0]  %s1, 2048, %s176, [#allocation6], 128, 128, 8
        $region16: #{tpu_custom_call.1} parent=11 // pred_fallthru
          _
        // Predicated region
        $region17: #{tpu_custom_call.1} parent=11 // pred_check
          %p182 = pneg %p86
        $region18: #{tpu_custom_call.1} parent=11 // pred_check_branch
          %184 = sbr.rel (%p182) target = $region20
        $region19: #{tpu_custom_call.1} parent=11 // pred_region
          %s186 = ssub.s32 2048, 2048
          %187 = vsyncadd [#allocation6], %s186
          %s188 = sshll.u32 [#allocation7], 4
          %s189 = int_to_ptr.vmem [resolvable:$true] %s188
          %194 = dma.hbm_to_vmem [thread:$0]  %s2, 2048, %s189, [#allocation6], 128, 128, 8
        $region20: #{tpu_custom_call.1} parent=11 // pred_fallthru
          _
        // Predicated region
        $region21: #{tpu_custom_call.1} parent=11 // pred_check
          %p195 = pneg %p107
        $region22: #{tpu_custom_call.1} parent=11 // pred_check_branch
          %197 = sbr.rel (%p195) target = $region24
        $region23: #{tpu_custom_call.1} parent=11 // pred_region
          _
        $region24: #{tpu_custom_call.1} parent=11 // pred_fallthru
          _
        // Predicated region
        $region25: #{tpu_custom_call.1} parent=11 // pred_check
          %p198 = pneg %p128
        $region26: #{tpu_custom_call.1} parent=11 // pred_check_branch
          %200 = sbr.rel (%p198) target = $region28
        $region27: #{tpu_custom_call.1} parent=11 // pred_region
          _
        $region28: #{tpu_custom_call.1} parent=11 // pred_fallthru
          _
      $region12: #{tpu_custom_call.1} parent=5 // pred_fallthru
        _
      %p201 = scmp.lt.s32.totalorder %s18, 2
      // Predicated region
      $region29: #{tpu_custom_call.1} parent=5 // pred_check
        %p202 = pneg %p201
      $region30: #{tpu_custom_call.1} parent=5 // pred_check_branch
        %204 = sbr.rel (%p202) target = $region32
      $region31: #{tpu_custom_call.1} parent=5 // pred_region
        // Predicated region
        $region33: #{tpu_custom_call.1} parent=31 // pred_check
          %p205 = pneg %p38
        $region34: #{tpu_custom_call.1} parent=31 // pred_check_branch
          %207 = sbr.rel (%p205) target = $region36
        $region35: #{tpu_custom_call.1} parent=31 // pred_region
          %s208 = sand.u32 %s28, 1
          %s209 = scalar_lea.sflag [#allocation3], %s208
          %s210 = sand.u32 %s28, 1
          %s211 = smul.addr %s210, 8
          %s212 = scalar_lea.vmem [#allocation2], %s211
          %s214 = ssub.s32 128, 128
          %215 = vsyncadd %s209, %s214
          %s216 = smul.addr %s18, 128
          %s217 = scalar_lea.hbm %s0, %s216
          %s219 = sshll.u32 %s212, 4
          %s220 = int_to_ptr.vmem [resolvable:$true] %s219
          %222 = dma.hbm_to_vmem [thread:$0]  %s217, 128, %s220, %s209
        $region36: #{tpu_custom_call.1} parent=31 // pred_fallthru
          _
      $region32: #{tpu_custom_call.1} parent=5 // pred_fallthru
        _
      %p223 = scmp.le.s32.totalorder 1, %s18
      %p224 = scmp.lt.s32.totalorder %s18, 3
      %p225 = pnand %p223, %p224
      %p226 = pneg %p225
      // Predicated region
      $region37: #{tpu_custom_call.1} parent=5 // pred_check
        _
      $region38: #{tpu_custom_call.1} parent=5 // pred_check_branch
        %228 = sbr.rel (%p225) target = $region40
      $region39: #{tpu_custom_call.1} parent=5 // pred_region
        %s229 = ssub.s32 %s18, 1
        %s230 = sand.u32 %s31, 1
        %s231 = scalar_lea.sflag [#allocation3], %s230
        %s232 = sand.u32 %s31, 1
        %s233 = smul.addr %s232, 8
        %s234 = scalar_lea.vmem [#allocation2], %s233
        // Predicated region
        $region41: #{tpu_custom_call.1} parent=39 // pred_check
          %p235 = pneg %p44
        $region42: #{tpu_custom_call.1} parent=39 // pred_check_branch
          %237 = sbr.rel (%p235) target = $region44
        $region43: #{tpu_custom_call.1} parent=39 // pred_region
          %238 = dma.done %s231, 128
        $region44: #{tpu_custom_call.1} parent=39 // pred_fallthru
          _
        // Predicated region
        $region45: #{tpu_custom_call.1} parent=39 // pred_check
          %p239 = pneg %p65
        $region46: #{tpu_custom_call.1} parent=39 // pred_check_branch
          %241 = sbr.rel (%p239) target = $region48
        $region47: #{tpu_custom_call.1} parent=39 // pred_region
          %242 = dma.done [#allocation6], 2048
        $region48: #{tpu_custom_call.1} parent=39 // pred_fallthru
          _
        // Predicated region
        $region49: #{tpu_custom_call.1} parent=39 // pred_check
          %p243 = pneg %p86
        $region50: #{tpu_custom_call.1} parent=39 // pred_check_branch
          %245 = sbr.rel (%p243) target = $region52
        $region51: #{tpu_custom_call.1} parent=39 // pred_region
          %246 = dma.done [#allocation6], 2048
        $region52: #{tpu_custom_call.1} parent=39 // pred_fallthru
          _
        %s247 = sand.u32 %s31, 1
        %s248 = scalar_lea.sflag [#allocation3], %s247
        %s249 = sand.u32 %s31, 1
        %s250 = smul.addr %s249, 8
        %s251 = scalar_lea.vmem [#allocation2], %s250
        %p252 = pneg %p44
        %p253 = pneg %p41
        %p254 = pneg %p65
        %p255 = pneg %p62
        %p256 = pneg %p86
        %p257 = pneg %p83
        %p258 = pneg %p107
        %p259 = pneg %p104
        %p260 = pneg %p128
        %p261 = pneg %p125
        %p262 = pneg %p154
        %p263 = pneg %p151
        %s264 = sand.u32 %s141, 1
        %s265 = scalar_lea.sflag [#allocation4], %s264
        %s266 = sand.u32 %s141, 1
        %s267 = smul.addr %s266, 8
        %s268 = scalar_lea.vmem [#allocation8], %s267
        %v269 = vld [vmem:[%s234] sm:$0xff]
        %v270 = vld [vmem:[#allocation5] sm:$0xff]
        %v271 = vld [vmem:[#allocation5 + $0x8] sm:$0xff]
        %v272 = vld [vmem:[#allocation5 + $0x10] sm:$0xff]
        %v273 = vld [vmem:[#allocation5 + $0x18] sm:$0xff]
        %v274 = vld [vmem:[#allocation5 + $0x20] sm:$0xff]
        %v275 = vld [vmem:[#allocation5 + $0x28] sm:$0xff]
        %v276 = vld [vmem:[#allocation5 + $0x30] sm:$0xff]
        %v277 = vld [vmem:[#allocation5 + $0x38] sm:$0xff]
        %v278 = vld [vmem:[#allocation5 + $0x40] sm:$0xff]
        %v279 = vld [vmem:[#allocation5 + $0x48] sm:$0xff]
        %v280 = vld [vmem:[#allocation5 + $0x50] sm:$0xff]
        %v281 = vld [vmem:[#allocation5 + $0x58] sm:$0xff]
        %v282 = vld [vmem:[#allocation5 + $0x60] sm:$0xff]
        %v283 = vld [vmem:[#allocation5 + $0x68] sm:$0xff]
        %v284 = vld [vmem:[#allocation5 + $0x70] sm:$0xff]
        %v285 = vld [vmem:[#allocation5 + $0x78] sm:$0xff]
        %286 = vmatprep.subr.mxu0 0.0
        %287 = vmatpush1.msra.mxu0 %v270
        %288 = vmatprep.subr.mxu0 0.0
        %289 = vmatpush1.msra.mxu0 %v271
        %290 = vmatprep.subr.mxu0 0.0
        %291 = vmatpush1.msra.mxu0 %v272
        %292 = vmatprep.subr.mxu0 0.0
        %293 = vmatpush1.msra.mxu0 %v273
        %294 = vmatprep.subr.mxu0 0.0
        %295 = vmatpush1.msra.mxu0 %v274
        %296 = vmatprep.subr.mxu0 0.0
        %297 = vmatpush1.msra.mxu0 %v275
        %298 = vmatprep.subr.mxu0 0.0
        %299 = vmatpush1.msra.mxu0 %v276
        %300 = vmatprep.subr.mxu0 0.0
        %301 = vmatpush1.msra.mxu0 %v277
        %302 = vmatprep.subr.mxu0 0.0
        %303 = vmatpush1.msra.mxu0 %v278
        %304 = vmatprep.subr.mxu0 0.0
        %305 = vmatpush1.msra.mxu0 %v279
        %306 = vmatprep.subr.mxu0 0.0
        %307 = vmatpush1.msra.mxu0 %v280
        %308 = vmatprep.subr.mxu0 0.0
        %309 = vmatpush1.msra.mxu0 %v281
        %310 = vmatprep.subr.mxu0 0.0
        %311 = vmatpush1.msra.mxu0 %v282
        %312 = vmatprep.subr.mxu0 0.0
        %313 = vmatpush1.msra.mxu0 %v283
        %314 = vmatprep.subr.mxu0 0.0
        %315 = vmatpush1.msra.mxu0 %v284
        %316 = vmatprep.subr.mxu0 0.0
        %317 = vmatpush1.msra.mxu0 %v285
        %318 = vmatprep.subr.mxu0 0.0
        %319 = vmatpush1.msra.mxu0 0.0
        %320 = vmatprep.subr.mxu0 0.0
        %321 = vmatpush1.msra.mxu0 0.0
        %322 = vmatprep.subr.mxu0 0.0
        %323 = vmatpush1.msra.mxu0 0.0
        %324 = vmatprep.subr.mxu0 0.0
        %325 = vmatpush1.msra.mxu0 0.0
        %326 = vmatprep.subr.mxu0 0.0
        %327 = vmatpush1.msra.mxu0 0.0
        %328 = vmatprep.subr.mxu0 0.0
        %329 = vmatpush1.msra.mxu0 0.0
        %330 = vmatprep.subr.mxu0 0.0
        %331 = vmatpush1.msra.mxu0 0.0
        %332 = vmatprep.subr.mxu0 0.0
        %333 = vmatpush1.msra.mxu0 0.0
        %334 = vmatprep.subr.mxu0 0.0
        %335 = vmatpush1.msra.mxu0 0.0
        %336 = vmatprep.subr.mxu0 0.0
        %337 = vmatpush1.msra.mxu0 0.0
        %338 = vmatprep.subr.mxu0 0.0
        %339 = vmatpush1.msra.mxu0 0.0
        %340 = vmatprep.subr.mxu0 0.0
        %341 = vmatpush1.msra.mxu0 0.0
        %342 = vmatprep.subr.mxu0 0.0
        %343 = vmatpush1.msra.mxu0 0.0
        %344 = vmatprep.subr.mxu0 0.0
        %345 = vmatpush1.msra.mxu0 0.0
        %346 = vmatprep.subr.mxu0 0.0
        %347 = vmatpush1.msra.mxu0 0.0
        %348 = vmatprep.subr.mxu0 0.0
        %349 = vmatpush1.msra.mxu0 0.0
        %350 = vmatprep.mubr.f32.mxu0 0.0
        %351 = vmatmul.mubr.f32.gmra.mrb[0].mxu0 %v269
        %v352 = vpop.f32.mrb[0].mxu0
        %v353 = vadd.f32 0.0, %v352
        %v354 = vpop.f32.mrb[0].mxu0
        %355 = vdwg.mxu0
        %v356 = vmax.f32 %v353, 0.0
        %v357 = vld [vmem:[#allocation7] sm:$0xff]
        %v358 = vld [vmem:[#allocation7 + $0x8] sm:$0xff]
        %v359 = vld [vmem:[#allocation7 + $0x10] sm:$0xff]
        %v360 = vld [vmem:[#allocation7 + $0x18] sm:$0xff]
        %v361 = vld [vmem:[#allocation7 + $0x20] sm:$0xff]
        %v362 = vld [vmem:[#allocation7 + $0x28] sm:$0xff]
        %v363 = vld [vmem:[#allocation7 + $0x30] sm:$0xff]
        %v364 = vld [vmem:[#allocation7 + $0x38] sm:$0xff]
        %v365 = vld [vmem:[#allocation7 + $0x40] sm:$0xff]
        %v366 = vld [vmem:[#allocation7 + $0x48] sm:$0xff]
        %v367 = vld [vmem:[#allocation7 + $0x50] sm:$0xff]
        %v368 = vld [vmem:[#allocation7 + $0x58] sm:$0xff]
        %v369 = vld [vmem:[#allocation7 + $0x60] sm:$0xff]
        %v370 = vld [vmem:[#allocation7 + $0x68] sm:$0xff]
        %v371 = vld [vmem:[#allocation7 + $0x70] sm:$0xff]
        %v372 = vld [vmem:[#allocation7 + $0x78] sm:$0xff]
        %373 = vmatprep.subr.mxu0 0.0
        %374 = vmatpush1.msra.mxu0 %v357
        %375 = vmatprep.subr.mxu0 0.0
        %376 = vmatpush1.msra.mxu0 %v358
        %377 = vmatprep.subr.mxu0 0.0
        %378 = vmatpush1.msra.mxu0 %v359
        %379 = vmatprep.subr.mxu0 0.0
        %380 = vmatpush1.msra.mxu0 %v360
        %381 = vmatprep.subr.mxu0 0.0
        %382 = vmatpush1.msra.mxu0 %v361
        %383 = vmatprep.subr.mxu0 0.0
        %384 = vmatpush1.msra.mxu0 %v362
        %385 = vmatprep.subr.mxu0 0.0
        %386 = vmatpush1.msra.mxu0 %v363
        %387 = vmatprep.subr.mxu0 0.0
        %388 = vmatpush1.msra.mxu0 %v364
        %389 = vmatprep.subr.mxu0 0.0
        %390 = vmatpush1.msra.mxu0 %v365
        %391 = vmatprep.subr.mxu0 0.0
        %392 = vmatpush1.msra.mxu0 %v366
        %393 = vmatprep.subr.mxu0 0.0
        %394 = vmatpush1.msra.mxu0 %v367
        %395 = vmatprep.subr.mxu0 0.0
        %396 = vmatpush1.msra.mxu0 %v368
        %397 = vmatprep.subr.mxu0 0.0
        %398 = vmatpush1.msra.mxu0 %v369
        %399 = vmatprep.subr.mxu0 0.0
        %400 = vmatpush1.msra.mxu0 %v370
        %401 = vmatprep.subr.mxu0 0.0
        %402 = vmatpush1.msra.mxu0 %v371
        %403 = vmatprep.subr.mxu0 0.0
        %404 = vmatpush1.msra.mxu0 %v372
        %405 = vmatprep.subr.mxu0 0.0
        %406 = vmatpush1.msra.mxu0 0.0
        %407 = vmatprep.subr.mxu0 0.0
        %408 = vmatpush1.msra.mxu0 0.0
        %409 = vmatprep.subr.mxu0 0.0
        %410 = vmatpush1.msra.mxu0 0.0
        %411 = vmatprep.subr.mxu0 0.0
        %412 = vmatpush1.msra.mxu0 0.0
        %413 = vmatprep.subr.mxu0 0.0
        %414 = vmatpush1.msra.mxu0 0.0
        %415 = vmatprep.subr.mxu0 0.0
        %416 = vmatpush1.msra.mxu0 0.0
        %417 = vmatprep.subr.mxu0 0.0
        %418 = vmatpush1.msra.mxu0 0.0
        %419 = vmatprep.subr.mxu0 0.0
        %420 = vmatpush1.msra.mxu0 0.0
        %421 = vmatprep.subr.mxu0 0.0
        %422 = vmatpush1.msra.mxu0 0.0
        %423 = vmatprep.subr.mxu0 0.0
        %424 = vmatpush1.msra.mxu0 0.0
        %425 = vmatprep.subr.mxu0 0.0
        %426 = vmatpush1.msra.mxu0 0.0
        %427 = vmatprep.subr.mxu0 0.0
        %428 = vmatpush1.msra.mxu0 0.0
        %429 = vmatprep.subr.mxu0 0.0
        %430 = vmatpush1.msra.mxu0 0.0
        %431 = vmatprep.subr.mxu0 0.0
        %432 = vmatpush1.msra.mxu0 0.0
        %433 = vmatprep.subr.mxu0 0.0
        %434 = vmatpush1.msra.mxu0 0.0
        %435 = vmatprep.subr.mxu0 0.0
        %436 = vmatpush1.msra.mxu0 0.0
        %437 = vmatprep.mubr.f32.mxu0 0.0
        %438 = vmatmul.mubr.f32.gmra.mrb[0].mxu0 %v356
        %v439 = vpop.f32.mrb[0].mxu0
        %v440 = vadd.f32 %v269, %v439
        %v441 = vpop.f32.mrb[0].mxu0
        %442 = vdwg.mxu0
        %v443 = vld [vmem:[%s3] sm:$0x1]
        %v444 = vld [vmem:[%s4] sm:$0x1]
        %445 = vadd.xlane.f32.xlu0 %v440
        %v446 = vpop.xlane.xlu0 %445
        %v447 = vmul.f32 %v440, %v440
        %448 = vadd.xlane.f32.xlu0 %v447
        %v449 = vpop.xlane.xlu0 %448
        %v450 = vmul.f32 %v446, 0.03125
        %v451 = vmul.f32 %v449, 0.03125
        %v452 = vmul.f32 %v450, %v450
        %v453 = vsub.f32 %v451, %v452
        %v454 = vmax.f32 %v453, 0.0
        %v455 = vsub.f32 %v440, %v450
        %v456 = vadd.f32 %v454, 1e-05
        %v457 = vrsqrt.pop %v456
        %v458 = vmul.f32 %v455, %v457
        %v460 = vlaneseq
        %v461 = vshrl.u32 %v460, 7
        %v462 = vsub.s32 0, %v461
        %v463 = vrot.slane %v443, %v462
        %v465 = vmul.f32 %v458, %v463
        %v467 = vlaneseq
        %v468 = vshrl.u32 %v467, 7
        %v469 = vsub.s32 0, %v468
        %v470 = vrot.slane %v444, %v469
        %v472 = vadd.f32 %v465, %v470
        %473 = vst [vmem:[%s268] sm:$0xff] %v472
        %s474 = sand.u32 %s141, 1
        %s475 = scalar_lea.sflag [#allocation4], %s474
        %s476 = sand.u32 %s141, 1
        %s477 = smul.addr %s476, 8
        %s478 = scalar_lea.vmem [#allocation8], %s477
        // Predicated region
        $region53: #{tpu_custom_call.1} parent=39 // pred_check
          %p479 = pneg %p151
        $region54: #{tpu_custom_call.1} parent=39 // pred_check_branch
          %481 = sbr.rel (%p479) target = $region56
        $region55: #{tpu_custom_call.1} parent=39 // pred_region
          %s483 = ssub.s32 128, 128
          %484 = vsyncadd %s475, %s483
          %s485 = smul.addr %s23, 128
          %s486 = scalar_lea.hbm %s5, %s485
          %s488 = sshll.u32 %s478, 4
          %s489 = int_to_ptr.vmem [resolvable:$true] %s488
          %491 = dma.vmem_to_hbm [thread:$0]  %s489, 128, %s486, %s475
        $region56: #{tpu_custom_call.1} parent=39 // pred_fallthru
          _
      $region40: #{tpu_custom_call.1} parent=5 // pred_fallthru
        _
      %p492 = scmp.le.s32.totalorder 2, %s18
      // Predicated region
      $region57: #{tpu_custom_call.1} parent=5 // pred_check
        %p493 = pneg %p492
      $region58: #{tpu_custom_call.1} parent=5 // pred_check_branch
        %495 = sbr.rel (%p493) target = $region60
      $region59: #{tpu_custom_call.1} parent=5 // pred_region
        %s496 = ssub.s32 %s18, 2
        // Predicated region
        $region61: #{tpu_custom_call.1} parent=59 // pred_check
          %p497 = pneg %p157
        $region62: #{tpu_custom_call.1} parent=59 // pred_check_branch
          %499 = sbr.rel (%p497) target = $region64
        $region63: #{tpu_custom_call.1} parent=59 // pred_region
          %s500 = sand.u32 %s142, 1
          %s501 = scalar_lea.sflag [#allocation4], %s500
          %s502 = sand.u32 %s142, 1
          %s503 = smul.addr %s502, 8
          %s504 = scalar_lea.vmem [#allocation8], %s503
          %505 = dma.done %s501, 128
        $region64: #{tpu_custom_call.1} parent=59 // pred_fallthru
          _
      $region60: #{tpu_custom_call.1} parent=5 // pred_fallthru
        _
    $region6: #{tpu_custom_call.1} parent=1 // loop_footer
      %s22 = sadd.s32 1, %s18
    $region7: #{tpu_custom_call.1} parent=1 // loop_footer_branch
      %17 = sbr.rel target = $region3
    $region8: #{tpu_custom_call.1} parent=1 // loop_exit
      _
    %506 = vsyncpa [#allocation3], 1
    %s507 = scalar_lea.sflag [#allocation3], 1
    %508 = vsyncpa %s507, 1
    %509 = vsyncpa [#allocation6], 1
    %510 = vsyncpa [#allocation4], 1
    %s511 = scalar_lea.sflag [#allocation4], 1
    %512 = vsyncpa %s511, 1

</llo_original>
